<compile_context>
chip_gen: v5e
topology: v5e:2x2
jax: 0.10.0
libtpu: 0.0.40
codegen_flags: <defaults>
</compile_context>

<pallas_src>
import math

import jax
import jax.numpy as jnp
from jax.experimental import pallas as pl
from jax.experimental.pallas import tpu as pltpu


def _policy_kernel(x_ref, w1_ref, b1_ref, w2_ref, b2_ref, wm_ref, bm_ref,
                   a_bound_ref, mean_ref):
    # Feature-major: x_ref is (state_dim, tile_b); batch sits on the lane axis.
    # Hidden layer 1: h = tanh(W1 @ x + b1)            -> (h1, tile_b)
    h = jnp.tanh(
        jnp.dot(w1_ref[...], x_ref[...], preferred_element_type=jnp.float32)
        + b1_ref[...]
    )
    # Hidden layer 2: h = tanh(W2 @ h + b2)            -> (h2, tile_b)
    h = jnp.tanh(
        jnp.dot(w2_ref[...], h.astype(w2_ref.dtype),
                preferred_element_type=jnp.float32)
        + b2_ref[...]
    )
    # Action-mean head: tanh(Wm @ h + bm) * a_bound    -> (action_dim, tile_b)
    mean = jnp.tanh(
        jnp.dot(wm_ref[...], h.astype(wm_ref.dtype),
                preferred_element_type=jnp.float32)
        + bm_ref[...]
    )
    mean_ref[...] = (mean * a_bound_ref[0, 0]).astype(mean_ref.dtype)


def policy_forward(x, params, *, a_bound=1.0, tile_b=8192,
                   matmul_dtype=jnp.float32):
    """Fused MLP-policy forward.

    Returns (action_mean, action_log_std, action_std), matching the PyTorch
    module's forward().  `params` use the native nn.Linear layout:
    weights (out_dim, in_dim), biases (out_dim, 1), log_std (1, action_dim).
    """
    w1, b1, w2, b2, wm, bm, log_std = params
    batch, state_dim = x.shape
    h1 = w1.shape[0]
    h2 = w2.shape[0]
    action_dim = wm.shape[0]

    # --- Batch tiling (batch lives on the 128-lane axis). ----------------
    padded = max(128, -(-batch // 128) * 128)       # multiple of 128 lanes
    tb = min(int(tile_b), padded)
    tb = max(128, (tb // 128) * 128)
    # v7x: keep >= 2 grid tiles when the batch allows it, so ("parallel",)
    # can shard the grid across both TensorCores (no effect on v5e/v6e).
    if padded > 128 and padded <= tb:
        tb = max(128, ((padded // 2) // 128) * 128)
    padded = -(-padded // tb) * tb                  # multiple of the tile
    grid = (padded // tb,)

    # --- Feature-major x: (state_dim, padded_batch). ----------------------
    xt = x.T
    if padded != batch:
        xt = jnp.pad(xt, ((0, 0), (0, padded - batch)))

    # Optional bf16 HBM stream (accumulate / activate stays f32 in-kernel).
    if matmul_dtype != jnp.float32:
        xt = xt.astype(matmul_dtype)
        w1c, w2c, wmc = (w.astype(matmul_dtype) for w in (w1, w2, wm))
    else:
        w1c, w2c, wmc = w1, w2, wm

    a_bound_arr = jnp.asarray(a_bound, jnp.float32).reshape(1, 1)

    vmem = pltpu.MemorySpace.VMEM

    def resident(arr):
        # Full-array block, constant index_map -> stays VMEM-resident.
        return pl.BlockSpec(arr.shape, lambda i: (0, 0), memory_space=vmem)

    # Advisory cost estimate for the XLA scheduler.
    flops = 2 * padded * (state_dim * h1 + h1 * h2 + h2 * action_dim)
    transcendentals = padded * (h1 + h2 + action_dim)
    param_bytes = sum(int(p.size) * p.dtype.itemsize
                      for p in (w1c, b1, w2c, b2, wmc, bm))
    bytes_accessed = (padded * state_dim * xt.dtype.itemsize
                      + padded * action_dim * 4 + param_bytes)

    mean_t = pl.pallas_call(
        _policy_kernel,
        out_shape=jax.ShapeDtypeStruct((action_dim, padded), jnp.float32),
        grid=grid,
        in_specs=[
            pl.BlockSpec((state_dim, tb), lambda i: (0, i), memory_space=vmem),
            resident(w1c), resident(b1),
            resident(w2c), resident(b2),
            resident(wmc), resident(bm),
            pl.BlockSpec(memory_space=pltpu.MemorySpace.SMEM),  # a_bound scalar
        ],
        out_specs=pl.BlockSpec((action_dim, tb), lambda i: (0, i),
                               memory_space=vmem),
        compiler_params=pltpu.CompilerParams(
            dimension_semantics=("parallel",)),   # v7x: batch tiles across TCs
        cost_estimate=pl.CostEstimate(
            flops=flops, transcendentals=transcendentals,
            bytes_accessed=bytes_accessed),
    )(xt, w1c, b1, w2c, b2, wmc, bm, a_bound_arr)

    mean = mean_t[:, :batch].T                      # (batch, action_dim)

    # log_std / std: tiny (1, action_dim) math; broadcast is metadata-level
    # inside jit.  (If downstream consumers accept the (1, action_dim) row,
    # skip the broadcast entirely to avoid the extra HBM writeback.)
    action_log_std = jnp.broadcast_to(log_std, mean.shape)
    action_std = jnp.broadcast_to(jnp.exp(log_std), mean.shape)
    return mean, action_log_std, action_std


def init_params(key, state_dim, action_dim, hidden_size=(100, 100), log_std=0.0):
    """Deterministic init mimicking nn.Linear defaults + the action_mean
    weight*0.1 / bias*0.0 scaling from the module's __init__.
    Weights are (out_dim, in_dim), biases (out_dim, 1) (feature-major)."""
    keys = jax.random.split(key, 2 * (len(hidden_size) + 1))
    params = []
    last_dim = state_dim
    k_idx = 0
    for nh in hidden_size:
        bound = 1.0 / math.sqrt(last_dim)
        w = jax.random.uniform(keys[k_idx], (nh, last_dim), jnp.float32,
                               minval=-bound, maxval=bound)
        b = jax.random.uniform(keys[k_idx + 1], (nh, 1), jnp.float32,
                               minval=-bound, maxval=bound)
        params.extend([w, b])
        last_dim = nh
        k_idx += 2
    bound = 1.0 / math.sqrt(last_dim)
    wm = jax.random.uniform(keys[k_idx], (action_dim, last_dim), jnp.float32,
                            minval=-bound, maxval=bound) * 0.1
    bm = jnp.zeros((action_dim, 1), jnp.float32)           # bias.mul_(0.0)
    log_std_param = jnp.ones((1, action_dim), jnp.float32) * log_std
    params.extend([wm, bm, log_std_param])
    return tuple(params)


def policy_forward_ref(x, params, *, a_bound=1.0):
    """Pure-JAX reference for correctness checking."""
    w1, b1, w2, b2, wm, bm, log_std = params
    h = jnp.tanh(x @ w1.T + b1.T)
    h = jnp.tanh(h @ w2.T + b2.T)
    mean = jnp.tanh(h @ wm.T + bm.T) * a_bound
    lsd = jnp.broadcast_to(log_std, mean.shape)
    return mean, lsd, jnp.exp(lsd)


if __name__ == "__main__":
    key = jax.random.PRNGKey(0)
    k_x, k_p, k_x2, k_x3 = jax.random.split(key, 4)

    # Small shapes consistent with the module: state_dim=16, hidden=(32,32), action_dim=8.
    state_dim, action_dim = 16, 8
    hidden = (32, 32)
    a_bound = 1.5
    params = init_params(k_p, state_dim, action_dim, hidden_size=hidden, log_std=0.0)

    # Case 1: multi-tile grid (exercises the pipeline + parallel batch tiles).
    batch = 300
    x = jax.random.normal(k_x, (batch, state_dim), jnp.float32)
    mean, log_std_out, std = policy_forward(x, params, a_bound=a_bound, tile_b=128)
    jax.block_until_ready((mean, log_std_out, std))
    mean_r, lsd_r, std_r = policy_forward_ref(x, params, a_bound=a_bound)
    assert jnp.allclose(mean, mean_r, atol=1e-5), "action_mean mismatch"
    assert jnp.allclose(log_std_out, lsd_r, atol=1e-6), "action_log_std mismatch"
    assert jnp.allclose(std, std_r, atol=1e-5), "action_std mismatch"

    # Case 2: small ragged batch (exercises padding to the 128-lane tile).
    batch2 = 7
    x2 = jax.random.normal(k_x2, (batch2, state_dim), jnp.float32)
    mean2, lsd2, std2 = policy_forward(x2, params, a_bound=a_bound)
    jax.block_until_ready((mean2, lsd2, std2))
    mean2_r, lsd2_r, std2_r = policy_forward_ref(x2, params, a_bound=a_bound)
    assert jnp.allclose(mean2, mean2_r, atol=1e-5), "action_mean mismatch (padded)"
    assert jnp.allclose(lsd2, lsd2_r, atol=1e-6), "action_log_std mismatch (padded)"
    assert jnp.allclose(std2, std2_r, atol=1e-5), "action_std mismatch (padded)"

    # Case 3: bf16 HBM stream for x / weights (f32 accumulate + tanh in-kernel).
    batch3 = 64
    x3 = jax.random.normal(k_x3, (batch3, state_dim), jnp.float32)
    mean3, _, _ = policy_forward(x3, params, a_bound=a_bound,
                                 matmul_dtype=jnp.bfloat16)
    jax.block_until_ready(mean3)
    mean3_r, _, _ = policy_forward_ref(x3, params, a_bound=a_bound)
    assert jnp.allclose(mean3, mean3_r, atol=5e-2), "action_mean mismatch (bf16)"

    print("KERNEL_OK")
</pallas_src>

<mosaic_0001>
module attributes {stable_mosaic.version = 11 : i64} {
  func.func @_policy_kernel(%arg0: i32, %arg1: memref<16x128xf32, #tpu.memory_space<vmem>>, %arg2: memref<32x16xf32, #tpu.memory_space<vmem>>, %arg3: memref<32x1xf32, #tpu.memory_space<vmem>>, %arg4: memref<32x32xf32, #tpu.memory_space<vmem>>, %arg5: memref<32x1xf32, #tpu.memory_space<vmem>>, %arg6: memref<8x32xf32, #tpu.memory_space<vmem>>, %arg7: memref<8x1xf32, #tpu.memory_space<vmem>>, %arg8: memref<1x1xf32, #tpu.memory_space<smem>>, %arg9: memref<8x128xf32, #tpu.memory_space<vmem>>) attributes {dimension_semantics = [#tpu.dimension_semantics<parallel>], iteration_bounds = array<i64: 3>, scalar_prefetch = 0 : i64, scratch_operands = 0 : i64, tpu.core_type = #tpu.core_type<tc>, window_params = [{transform_indices = @transform_0, window_bounds = array<i64: 16, 128>}, {pipeline_mode = #tpu.pipeline_mode<synchronous>, transform_indices = @transform_1, window_bounds = array<i64: 32, 16>}, {pipeline_mode = #tpu.pipeline_mode<synchronous>, transform_indices = @transform_2, window_bounds = array<i64: 32, 1>}, {pipeline_mode = #tpu.pipeline_mode<synchronous>, transform_indices = @transform_3, window_bounds = array<i64: 32, 32>}, {pipeline_mode = #tpu.pipeline_mode<synchronous>, transform_indices = @transform_4, window_bounds = array<i64: 32, 1>}, {pipeline_mode = #tpu.pipeline_mode<synchronous>, transform_indices = @transform_5, window_bounds = array<i64: 8, 32>}, {pipeline_mode = #tpu.pipeline_mode<synchronous>, transform_indices = @transform_6, window_bounds = array<i64: 8, 1>}, {transform_indices = @transform_7, window_bounds = array<i64: 1, 1>}, {transform_indices = @transform_8, window_bounds = array<i64: 8, 128>}]} {
    %c0 = arith.constant 0 : index
    %c0_0 = arith.constant 0 : index
    %0 = vector.load %arg2[%c0, %c0_0] : memref<32x16xf32, #tpu.memory_space<vmem>>, vector<32x16xf32>
    %c0_1 = arith.constant 0 : index
    %c0_2 = arith.constant 0 : index
    %1 = vector.load %arg1[%c0_1, %c0_2] : memref<16x128xf32, #tpu.memory_space<vmem>>, vector<16x128xf32>
    %cst = arith.constant dense<0.000000e+00> : vector<32x128xf32>
    %2 = tpu.matmul %0, %1, %cst {dimension_numbers = #tpu.dot_dimension_numbers<[1], [0], [0], [1], [0, 0, 1, 1], [], []>} : vector<32x16xf32>, vector<16x128xf32>, vector<32x128xf32> -> vector<32x128xf32>
    %c0_3 = arith.constant 0 : index
    %c0_4 = arith.constant 0 : index
    %3 = vector.load %arg3[%c0_3, %c0_4] : memref<32x1xf32, #tpu.memory_space<vmem>>, vector<32x1xf32>
    %4 = vector.broadcast %3 : vector<32x1xf32> to vector<32x128xf32>
    %5 = arith.addf %2, %4 : vector<32x128xf32>
    %6 = math.tanh %5 : vector<32x128xf32>
    %c0_5 = arith.constant 0 : index
    %c0_6 = arith.constant 0 : index
    %7 = vector.load %arg4[%c0_5, %c0_6] : memref<32x32xf32, #tpu.memory_space<vmem>>, vector<32x32xf32>
    %cst_7 = arith.constant dense<0.000000e+00> : vector<32x128xf32>
    %8 = tpu.matmul %7, %6, %cst_7 {dimension_numbers = #tpu.dot_dimension_numbers<[1], [0], [0], [1], [0, 0, 1, 1], [], []>} : vector<32x32xf32>, vector<32x128xf32>, vector<32x128xf32> -> vector<32x128xf32>
    %c0_8 = arith.constant 0 : index
    %c0_9 = arith.constant 0 : index
    %9 = vector.load %arg5[%c0_8, %c0_9] : memref<32x1xf32, #tpu.memory_space<vmem>>, vector<32x1xf32>
    %10 = vector.broadcast %9 : vector<32x1xf32> to vector<32x128xf32>
    %11 = arith.addf %8, %10 : vector<32x128xf32>
    %12 = math.tanh %11 : vector<32x128xf32>
    %c0_10 = arith.constant 0 : index
    %c0_11 = arith.constant 0 : index
    %13 = vector.load %arg6[%c0_10, %c0_11] : memref<8x32xf32, #tpu.memory_space<vmem>>, vector<8x32xf32>
    %cst_12 = arith.constant dense<0.000000e+00> : vector<8x128xf32>
    %14 = tpu.matmul %13, %12, %cst_12 {dimension_numbers = #tpu.dot_dimension_numbers<[1], [0], [0], [1], [0, 0, 1, 1], [], []>} : vector<8x32xf32>, vector<32x128xf32>, vector<8x128xf32> -> vector<8x128xf32>
    %c0_13 = arith.constant 0 : index
    %c0_14 = arith.constant 0 : index
    %15 = vector.load %arg7[%c0_13, %c0_14] : memref<8x1xf32, #tpu.memory_space<vmem>>, vector<8x1xf32>
    %16 = vector.broadcast %15 : vector<8x1xf32> to vector<8x128xf32>
    %17 = arith.addf %14, %16 : vector<8x128xf32>
    %18 = math.tanh %17 : vector<8x128xf32>
    %c0_15 = arith.constant 0 : index
    %c0_16 = arith.constant 0 : index
    %19 = memref.load %arg8[%c0_15, %c0_16] : memref<1x1xf32, #tpu.memory_space<smem>>
    %20 = vector.broadcast %19 : f32 to vector<8x128xf32>
    %21 = arith.mulf %18, %20 : vector<8x128xf32>
    %c0_17 = arith.constant 0 : index
    %c0_18 = arith.constant 0 : index
    %22 = vector.load %arg9[%c0_17, %c0_18] : memref<8x128xf32, #tpu.memory_space<vmem>>, vector<8x128xf32>
    tpu.vector_store %arg9[%c0_17, %c0_18], %21 {strides = array<i32>} : memref<8x128xf32, #tpu.memory_space<vmem>>, vector<8x128xf32>,
    return
  }
  func.func @transform_0(%arg0: i32) -> (i32, i32) {
    %c0_i32 = arith.constant 0 : i32
    %c0_i32_0 = arith.constant 0 : i32
    return %c0_i32, %arg0 : i32, i32
  }
  func.func @transform_1(%arg0: i32) -> (i32, i32) {
    %c0_i32 = arith.constant 0 : i32
    %c0_i32_0 = arith.constant 0 : i32
    %c0_i32_1 = arith.constant 0 : i32
    return %c0_i32, %c0_i32_0 : i32, i32
  }
  func.func @transform_2(%arg0: i32) -> (i32, i32) {
    %c0_i32 = arith.constant 0 : i32
    %c0_i32_0 = arith.constant 0 : i32
    %c0_i32_1 = arith.constant 0 : i32
    return %c0_i32, %c0_i32_0 : i32, i32
  }
  func.func @transform_3(%arg0: i32) -> (i32, i32) {
    %c0_i32 = arith.constant 0 : i32
    %c0_i32_0 = arith.constant 0 : i32
    %c0_i32_1 = arith.constant 0 : i32
    return %c0_i32, %c0_i32_0 : i32, i32
  }
  func.func @transform_4(%arg0: i32) -> (i32, i32) {
    %c0_i32 = arith.constant 0 : i32
    %c0_i32_0 = arith.constant 0 : i32
    %c0_i32_1 = arith.constant 0 : i32
    return %c0_i32, %c0_i32_0 : i32, i32
  }
  func.func @transform_5(%arg0: i32) -> (i32, i32) {
    %c0_i32 = arith.constant 0 : i32
    %c0_i32_0 = arith.constant 0 : i32
    %c0_i32_1 = arith.constant 0 : i32
    return %c0_i32, %c0_i32_0 : i32, i32
  }
  func.func @transform_6(%arg0: i32) -> (i32, i32) {
    %c0_i32 = arith.constant 0 : i32
    %c0_i32_0 = arith.constant 0 : i32
    %c0_i32_1 = arith.constant 0 : i32
    return %c0_i32, %c0_i32_0 : i32, i32
  }
  func.func @transform_7(%arg0: i32) -> (i32, i32) {
    %c0_i32 = arith.constant 0 : i32
    %c0_i32_0 = arith.constant 0 : i32
    %c0_i32_1 = arith.constant 0 : i32
    return %c0_i32, %c0_i32_0 : i32, i32
  }
  func.func @transform_8(%arg0: i32) -> (i32, i32) {
    %c0_i32 = arith.constant 0 : i32
    %c0_i32_0 = arith.constant 0 : i32
    return %c0_i32, %arg0 : i32, i32
  }
}

</mosaic_0001>

<llo_original>
// kernel: tpu_custom_call.1
$region0: #{tpu_custom_call.1}
  #allocation0 [shape = 'u32[]', space=smem, size = 0x4, offset = 0x4, fixed_abs, tag = 'smem constant byte address 0x4 - core index']
  #allocation1 [shape = 'u32[72,128]{1,0:T(1,128)}', space=vmem, size = 0x9000, scoped, tag = 'internal scratch']
  #allocation2 [shape = 'f32[1,1]{1,0:T(1,128)S(6)}', space=smem, size = 0x200, scoped, tag = 'scoped memory for tpu_custom_call.1']
  %s0 = inlined_call_operand.vmem [shape: f32[16,384], index: 0, kind: input, shape index: {}]
  %s1 = inlined_call_operand.vmem [shape: f32[32,16], index: 1, kind: input, shape index: {}]
  %s2 = inlined_call_operand.vmem [shape: f32[32,1], index: 2, kind: input, shape index: {}]
  %s3 = inlined_call_operand.vmem [shape: f32[32,32], index: 3, kind: input, shape index: {}]
  %s4 = inlined_call_operand.vmem [shape: f32[32,1], index: 4, kind: input, shape index: {}]
  %s5 = inlined_call_operand.vmem [shape: f32[8,32], index: 5, kind: input, shape index: {}]
  %s6 = inlined_call_operand.vmem [shape: f32[8,1], index: 6, kind: input, shape index: {}]
  %s7 = inlined_call_operand.<no memory space> [shape: f32[1,1], index: 7, kind: input, shape index: {}]
  %s8 = inlined_call_operand.hbm [shape: f32[8,384], index: 8, kind: output, shape index: {}]
  %s9 = sld [smem:[#allocation0]]
  $region103: #{tpu_custom_call.1} parent=0
    _
  %s11 = ssub.s32 1, %s9
  %s12 = scalar_select 0, %s11, %s9
  %13 = sst [smem:[#allocation2]] %s7
  $region1: #{tpu_custom_call.1} parent=0
    #allocation3 [shape = 'u8[16384]{0}', space=vmem, size = 0x4000, scoped, tag = 'input window, operand 0']
    #allocation4 [shape = 'u8[8192]{0}', space=vmem, size = 0x2000, scoped, tag = 'output window, operand 0']
    #allocation5 [shape = 's32[2]{0}', space=sflag, size = 0x8, scoped, tag = 'scoped memory for tpu_custom_call.1']
    %14 = vsyncpa [#allocation5], 0
    %s15 = scalar_lea.sflag [#allocation5], 1
    %16 = vsyncpa %s15, 0
    loop: start=0, step=1, limit=5
    $region2: #{tpu_custom_call.1} parent=1 // loop_pre_header
      _
    $region3: #{tpu_custom_call.1} parent=1 // loop_header
      %s18 = sphi 0, %s22
      %p19 = scmp.ge.s32.totalorder %s18, 5
      %s28 = sphi 0, %s30
      %s31 = sphi 0, %s28
      %s32 = sphi 0, %s31
      %s48 = sphi 0, %s32
      %s52 = sphi 0, %s52
      %s54 = sphi 0, %s52
      %s55 = sphi 0, %s54
      %s69 = sphi 0, %s55
      %s73 = sphi 0, %s73
      %s75 = sphi 0, %s73
      %s76 = sphi 0, %s75
      %s90 = sphi 0, %s76
      %s94 = sphi 0, %s94
      %s96 = sphi 0, %s94
      %s97 = sphi 0, %s96
      %s111 = sphi 0, %s97
      %s115 = sphi 0, %s115
      %s117 = sphi 0, %s115
      %s118 = sphi 0, %s117
      %s132 = sphi 0, %s118
      %s136 = sphi 0, %s136
      %s138 = sphi 0, %s136
      %s139 = sphi 0, %s138
      %s153 = sphi 0, %s139
      %s157 = sphi 0, %s157
      %s159 = sphi 0, %s157
      %s160 = sphi 0, %s159
      %s174 = sphi 0, %s160
      %s178 = sphi 0, %s178
      %s180 = sphi 0, %s178
      %s181 = sphi 0, %s180
      %s195 = sphi 0, %s181
      %s201 = sphi 0, %s203
      %s204 = sphi 0, %s201
      %s205 = sphi 0, %s204
      %s221 = sphi 0, %s205
    $region4: #{tpu_custom_call.1} parent=1 // loop_header_branch
      %21 = sbr.rel (%p19) target = $region8
    $region5: #{tpu_custom_call.1} parent=1 // loop_body
      %s23 = ssub.s32 %s18, 1
      %s24 = ssub.s32 %s18, 2
      %s25 = sadd.s32 %s18, 1
      %s26 = ssub.s32 %s18, %s25
      %p27 = scmp.eq.s32.totalorder %s26, 0
      %s29 = sadd.s32 %s28, 1
      %s30 = scalar_select %p27, %s28, %s29
      %p33 = pneg %p27
      %p34 = scmp.eq.s32.totalorder %s18, 2
      %p35 = por %p33, %p34
      %p36 = scmp.ne.s32.totalorder %s28, %s31
      %p37 = scmp.eq.s32.totalorder %s18, 0
      %p38 = por %p36, %p37
      %p39 = scmp.ne.s32.totalorder %s28, %s31
      %p40 = scmp.eq.s32.totalorder %s23, 2
      %p41 = por %p39, %p40
      %p42 = scmp.ne.s32.totalorder %s31, %s32
      %p43 = scmp.eq.s32.totalorder %s23, 0
      %p44 = por %p42, %p43
      %p45 = scmp.ne.s32.totalorder %s31, %s32
      %p46 = scmp.eq.s32.totalorder %s24, 2
      %p47 = por %p45, %p46
      %p49 = scmp.ne.s32.totalorder %s32, %s48
      %p50 = scmp.eq.s32.totalorder %s24, 0
      %p51 = por %p49, %p50
      %s53 = sadd.s32 %s52, 1
      %p56 = scmp.eq.s32.totalorder %s18, 2
      %p57 = scmp.ne.s32.totalorder %s52, %s54
      %p58 = scmp.eq.s32.totalorder %s18, 0
      %p59 = por %p57, %p58
      %p60 = scmp.ne.s32.totalorder %s52, %s54
      %p61 = scmp.eq.s32.totalorder %s23, 2
      %p62 = por %p60, %p61
      %p63 = scmp.ne.s32.totalorder %s54, %s55
      %p64 = scmp.eq.s32.totalorder %s23, 0
      %p65 = por %p63, %p64
      %p66 = scmp.ne.s32.totalorder %s54, %s55
      %p67 = scmp.eq.s32.totalorder %s24, 2
      %p68 = por %p66, %p67
      %p70 = scmp.ne.s32.totalorder %s55, %s69
      %p71 = scmp.eq.s32.totalorder %s24, 0
      %p72 = por %p70, %p71
      %s74 = sadd.s32 %s73, 1
      %p77 = scmp.eq.s32.totalorder %s18, 2
      %p78 = scmp.ne.s32.totalorder %s73, %s75
      %p79 = scmp.eq.s32.totalorder %s18, 0
      %p80 = por %p78, %p79
      %p81 = scmp.ne.s32.totalorder %s73, %s75
      %p82 = scmp.eq.s32.totalorder %s23, 2
      %p83 = por %p81, %p82
      %p84 = scmp.ne.s32.totalorder %s75, %s76
      %p85 = scmp.eq.s32.totalorder %s23, 0
      %p86 = por %p84, %p85
      %p87 = scmp.ne.s32.totalorder %s75, %s76
      %p88 = scmp.eq.s32.totalorder %s24, 2
      %p89 = por %p87, %p88
      %p91 = scmp.ne.s32.totalorder %s76, %s90
      %p92 = scmp.eq.s32.totalorder %s24, 0
      %p93 = por %p91, %p92
      %s95 = sadd.s32 %s94, 1
      %p98 = scmp.eq.s32.totalorder %s18, 2
      %p99 = scmp.ne.s32.totalorder %s94, %s96
      %p100 = scmp.eq.s32.totalorder %s18, 0
      %p101 = por %p99, %p100
      %p102 = scmp.ne.s32.totalorder %s94, %s96
      %p103 = scmp.eq.s32.totalorder %s23, 2
      %p104 = por %p102, %p103
      %p105 = scmp.ne.s32.totalorder %s96, %s97
      %p106 = scmp.eq.s32.totalorder %s23, 0
      %p107 = por %p105, %p106
      %p108 = scmp.ne.s32.totalorder %s96, %s97
      %p109 = scmp.eq.s32.totalorder %s24, 2
      %p110 = por %p108, %p109
      %p112 = scmp.ne.s32.totalorder %s97, %s111
      %p113 = scmp.eq.s32.totalorder %s24, 0
      %p114 = por %p112, %p113
      %s116 = sadd.s32 %s115, 1
      %p119 = scmp.eq.s32.totalorder %s18, 2
      %p120 = scmp.ne.s32.totalorder %s115, %s117
      %p121 = scmp.eq.s32.totalorder %s18, 0
      %p122 = por %p120, %p121
      %p123 = scmp.ne.s32.totalorder %s115, %s117
      %p124 = scmp.eq.s32.totalorder %s23, 2
      %p125 = por %p123, %p124
      %p126 = scmp.ne.s32.totalorder %s117, %s118
      %p127 = scmp.eq.s32.totalorder %s23, 0
      %p128 = por %p126, %p127
      %p129 = scmp.ne.s32.totalorder %s117, %s118
      %p130 = scmp.eq.s32.totalorder %s24, 2
      %p131 = por %p129, %p130
      %p133 = scmp.ne.s32.totalorder %s118, %s132
      %p134 = scmp.eq.s32.totalorder %s24, 0
      %p135 = por %p133, %p134
      %s137 = sadd.s32 %s136, 1
      %p140 = scmp.eq.s32.totalorder %s18, 2
      %p141 = scmp.ne.s32.totalorder %s136, %s138
      %p142 = scmp.eq.s32.totalorder %s18, 0
      %p143 = por %p141, %p142
      %p144 = scmp.ne.s32.totalorder %s136, %s138
      %p145 = scmp.eq.s32.totalorder %s23, 2
      %p146 = por %p144, %p145
      %p147 = scmp.ne.s32.totalorder %s138, %s139
      %p148 = scmp.eq.s32.totalorder %s23, 0
      %p149 = por %p147, %p148
      %p150 = scmp.ne.s32.totalorder %s138, %s139
      %p151 = scmp.eq.s32.totalorder %s24, 2
      %p152 = por %p150, %p151
      %p154 = scmp.ne.s32.totalorder %s139, %s153
      %p155 = scmp.eq.s32.totalorder %s24, 0
      %p156 = por %p154, %p155
      %s158 = sadd.s32 %s157, 1
      %p161 = scmp.eq.s32.totalorder %s18, 2
      %p162 = scmp.ne.s32.totalorder %s157, %s159
      %p163 = scmp.eq.s32.totalorder %s18, 0
      %p164 = por %p162, %p163
      %p165 = scmp.ne.s32.totalorder %s157, %s159
      %p166 = scmp.eq.s32.totalorder %s23, 2
      %p167 = por %p165, %p166
      %p168 = scmp.ne.s32.totalorder %s159, %s160
      %p169 = scmp.eq.s32.totalorder %s23, 0
      %p170 = por %p168, %p169
      %p171 = scmp.ne.s32.totalorder %s159, %s160
      %p172 = scmp.eq.s32.totalorder %s24, 2
      %p173 = por %p171, %p172
      %p175 = scmp.ne.s32.totalorder %s160, %s174
      %p176 = scmp.eq.s32.totalorder %s24, 0
      %p177 = por %p175, %p176
      %s179 = sadd.s32 %s178, 1
      %p182 = scmp.eq.s32.totalorder %s18, 2
      %p183 = scmp.ne.s32.totalorder %s178, %s180
      %p184 = scmp.eq.s32.totalorder %s18, 0
      %p185 = por %p183, %p184
      %p186 = scmp.ne.s32.totalorder %s178, %s180
      %p187 = scmp.eq.s32.totalorder %s23, 2
      %p188 = por %p186, %p187
      %p189 = scmp.ne.s32.totalorder %s180, %s181
      %p190 = scmp.eq.s32.totalorder %s23, 0
      %p191 = por %p189, %p190
      %p192 = scmp.ne.s32.totalorder %s180, %s181
      %p193 = scmp.eq.s32.totalorder %s24, 2
      %p194 = por %p192, %p193
      %p196 = scmp.ne.s32.totalorder %s181, %s195
      %p197 = scmp.eq.s32.totalorder %s24, 0
      %p198 = por %p196, %p197
      %s199 = ssub.s32 %s18, %s25
      %p200 = scmp.eq.s32.totalorder %s199, 0
      %s202 = sadd.s32 %s201, 1
      %s203 = scalar_select %p200, %s201, %s202
      %p206 = pneg %p200
      %p207 = scmp.eq.s32.totalorder %s18, 2
      %p208 = por %p206, %p207
      %p209 = scmp.ne.s32.totalorder %s201, %s204
      %p210 = scmp.eq.s32.totalorder %s18, 0
      %p211 = por %p209, %p210
      %p212 = scmp.ne.s32.totalorder %s201, %s204
      %p213 = scmp.eq.s32.totalorder %s23, 2
      %p214 = por %p212, %p213
      %p215 = scmp.ne.s32.totalorder %s204, %s205
      %p216 = scmp.eq.s32.totalorder %s23, 0
      %p217 = por %p215, %p216
      %p218 = scmp.ne.s32.totalorder %s204, %s205
      %p219 = scmp.eq.s32.totalorder %s24, 2
      %p220 = por %p218, %p219
      %p222 = scmp.ne.s32.totalorder %s205, %s221
      %p223 = scmp.eq.s32.totalorder %s24, 0
      %p224 = por %p222, %p223
      %p225 = scmp.le.s32.totalorder 1, %s18
      %p226 = scmp.lt.s32.totalorder %s18, 4
      %p227 = pnand %p225, %p226
      %p228 = pneg %p227
      // Predicated region
      $region9: #{tpu_custom_call.1} parent=5 // pred_check
        _
      $region10: #{tpu_custom_call.1} parent=5 // pred_check_branch
        %230 = sbr.rel (%p227) target = $region12
      $region11: #{tpu_custom_call.1} parent=5 // pred_region
        %s231 = ssub.s32 %s18, 1
        // Predicated region
        $region13: #{tpu_custom_call.1} parent=11 // pred_check
          %p232 = pneg %p65
        $region14: #{tpu_custom_call.1} parent=11 // pred_check_branch
          %234 = sbr.rel (%p232) target = $region16
        $region15: #{tpu_custom_call.1} parent=11 // pred_region
          _
        $region16: #{tpu_custom_call.1} parent=11 // pred_fallthru
          _
        // Predicated region
        $region17: #{tpu_custom_call.1} parent=11 // pred_check
          %p235 = pneg %p86
        $region18: #{tpu_custom_call.1} parent=11 // pred_check_branch
          %237 = sbr.rel (%p235) target = $region20
        $region19: #{tpu_custom_call.1} parent=11 // pred_region
          _
        $region20: #{tpu_custom_call.1} parent=11 // pred_fallthru
          _
        // Predicated region
        $region21: #{tpu_custom_call.1} parent=11 // pred_check
          %p238 = pneg %p107
        $region22: #{tpu_custom_call.1} parent=11 // pred_check_branch
          %240 = sbr.rel (%p238) target = $region24
        $region23: #{tpu_custom_call.1} parent=11 // pred_region
          _
        $region24: #{tpu_custom_call.1} parent=11 // pred_fallthru
          _
        // Predicated region
        $region25: #{tpu_custom_call.1} parent=11 // pred_check
          %p241 = pneg %p128
        $region26: #{tpu_custom_call.1} parent=11 // pred_check_branch
          %243 = sbr.rel (%p241) target = $region28
        $region27: #{tpu_custom_call.1} parent=11 // pred_region
          _
        $region28: #{tpu_custom_call.1} parent=11 // pred_fallthru
          _
        // Predicated region
        $region29: #{tpu_custom_call.1} parent=11 // pred_check
          %p244 = pneg %p149
        $region30: #{tpu_custom_call.1} parent=11 // pred_check_branch
          %246 = sbr.rel (%p244) target = $region32
        $region31: #{tpu_custom_call.1} parent=11 // pred_region
          _
        $region32: #{tpu_custom_call.1} parent=11 // pred_fallthru
          _
        // Predicated region
        $region33: #{tpu_custom_call.1} parent=11 // pred_check
          %p247 = pneg %p170
        $region34: #{tpu_custom_call.1} parent=11 // pred_check_branch
          %249 = sbr.rel (%p247) target = $region36
        $region35: #{tpu_custom_call.1} parent=11 // pred_region
          _
        $region36: #{tpu_custom_call.1} parent=11 // pred_fallthru
          _
        // Predicated region
        $region37: #{tpu_custom_call.1} parent=11 // pred_check
          %p250 = pneg %p191
        $region38: #{tpu_custom_call.1} parent=11 // pred_check_branch
          %252 = sbr.rel (%p250) target = $region40
        $region39: #{tpu_custom_call.1} parent=11 // pred_region
          _
        $region40: #{tpu_custom_call.1} parent=11 // pred_fallthru
          _
      $region12: #{tpu_custom_call.1} parent=5 // pred_fallthru
        _
      %p253 = scmp.lt.s32.totalorder %s18, 3
      // Predicated region
      $region41: #{tpu_custom_call.1} parent=5 // pred_check
        %p254 = pneg %p253
      $region42: #{tpu_custom_call.1} parent=5 // pred_check_branch
        %256 = sbr.rel (%p254) target = $region44
      $region43: #{tpu_custom_call.1} parent=5 // pred_region
        // Predicated region
        $region45: #{tpu_custom_call.1} parent=43 // pred_check
          %p257 = pneg %p38
        $region46: #{tpu_custom_call.1} parent=43 // pred_check_branch
          %259 = sbr.rel (%p257) target = $region48
        $region47: #{tpu_custom_call.1} parent=43 // pred_region
          %s260 = sand.u32 %s28, 1
          %s261 = sand.u32 %s28, 1
          %s262 = smul.addr %s261, 16
          %s263 = scalar_lea.vmem [#allocation3], %s262
          %s264 = smul.addr %s18, 8
          %s265 = scalar_lea.vmem %s0, %s264
          // Predicated region
          $region49: #{tpu_custom_call.1} parent=47 // pred_check
            _
          $region50: #{tpu_custom_call.1} parent=47 // pred_check_branch
            %267 = sbr.rel (0) target = $region52
          $region51: #{tpu_custom_call.1} parent=47 // pred_region
            // Predicated region
            $region53: #{tpu_custom_call.1} parent=51 // pred_check
              _
            $region54: #{tpu_custom_call.1} parent=51 // pred_check_branch
              %269 = sbr.rel (0) target = $region56
            $region55: #{tpu_custom_call.1} parent=51 // pred_region
              // Predicated region
              $region68: #{tpu_custom_call.1} parent=55 // pred_check
                _
              $region69: #{tpu_custom_call.1} parent=55 // pred_check_branch
                %287 = sbr.rel (0) target = $region71
              $region70: #{tpu_custom_call.1} parent=55 // pred_region
                loop: start=0, step=1, limit=1
                $region72: #{tpu_custom_call.1} parent=70 // loop_pre_header
                  _
                $region73: #{tpu_custom_call.1} parent=70 // loop_header
                  %s289 = sphi 0, %s293
                  %p290 = scmp.ge.s32.totalorder %s289, 1
                  %s294 = sphi %s265, %s265
                  %s295 = sphi %s263, %s263
                $region74: #{tpu_custom_call.1} parent=70 // loop_header_branch
                  %292 = sbr.rel (%p290) target = $region78
                $region75: #{tpu_custom_call.1} parent=70 // loop_body
                  %v296 = vld [vmem:[%s294] sm:$0xff]
                  %297 = vst [vmem:[%s295] sm:$0xff] %v296
                  %v298 = vld [vmem:[%s294 + $0x18] sm:$0xff]
                  %299 = vst [vmem:[%s295 + $0x8] sm:$0xff] %v298
                $region76: #{tpu_custom_call.1} parent=70 // loop_footer
                  %s293 = sadd.s32 1, %s289
                $region77: #{tpu_custom_call.1} parent=70 // loop_footer_branch
                  %288 = sbr.rel target = $region73
                $region78: #{tpu_custom_call.1} parent=70 // loop_exit
                  _
              $region71: #{tpu_custom_call.1} parent=55 // pred_fallthru
                _
              // Predicated region
              $region79: #{tpu_custom_call.1} parent=55 // pred_check
                _
              $region80: #{tpu_custom_call.1} parent=55 // pred_check_branch
                %301 = sbr.rel target = $region82
              $region81: #{tpu_custom_call.1} parent=55 // pred_region
                _
              $region82: #{tpu_custom_call.1} parent=55 // pred_fallthru
                _
            $region56: #{tpu_custom_call.1} parent=51 // pred_fallthru
              _
            // Predicated region
            $region57: #{tpu_custom_call.1} parent=51 // pred_check
              _
            $region58: #{tpu_custom_call.1} parent=51 // pred_check_branch
              %271 = sbr.rel target = $region60
            $region59: #{tpu_custom_call.1} parent=51 // pred_region
              %s273 = ssub.s32 256, 1
              loop: start=0, step=1, limit=1
              $region61: #{tpu_custom_call.1} parent=59 // loop_pre_header
                _
              $region62: #{tpu_custom_call.1} parent=59 // loop_header
                %s275 = sphi 0, %s279
                %p276 = scmp.ge.s32.totalorder %s275, 1
                %s280 = sphi %s265, %s265
                %s281 = sphi %s263, %s263
              $region63: #{tpu_custom_call.1} parent=59 // loop_header_branch
                %278 = sbr.rel (%p276) target = $region67
              $region64: #{tpu_custom_call.1} parent=59 // loop_body
                %v282 = vld [vmem:[%s280] sm:%s273]
                %283 = vst [vmem:[%s281] sm:%s273] %v282
                %v284 = vld [vmem:[%s280 + $0x18] sm:%s273]
                %285 = vst [vmem:[%s281 + $0x8] sm:%s273] %v284
              $region65: #{tpu_custom_call.1} parent=59 // loop_footer
                %s279 = sadd.s32 1, %s275
              $region66: #{tpu_custom_call.1} parent=59 // loop_footer_branch
                %274 = sbr.rel target = $region62
              $region67: #{tpu_custom_call.1} parent=59 // loop_exit
                _
            $region60: #{tpu_custom_call.1} parent=51 // pred_fallthru
              _
          $region52: #{tpu_custom_call.1} parent=47 // pred_fallthru
            _
          %302 = vnop
        $region48: #{tpu_custom_call.1} parent=43 // pred_fallthru
          _
      $region44: #{tpu_custom_call.1} parent=5 // pred_fallthru
        _
      %p303 = scmp.le.s32.totalorder 1, %s18
      %p304 = scmp.lt.s32.totalorder %s18, 4
      %p305 = pnand %p303, %p304
      %p306 = pneg %p305
      // Predicated region
      $region83: #{tpu_custom_call.1} parent=5 // pred_check
        _
      $region84: #{tpu_custom_call.1} parent=5 // pred_check_branch
        %308 = sbr.rel (%p305) target = $region86
      $region85: #{tpu_custom_call.1} parent=5 // pred_region
        %s309 = ssub.s32 %s18, 1
        %s310 = sand.u32 %s31, 1
        %s311 = sand.u32 %s31, 1
        %s312 = smul.addr %s311, 16
        %s313 = scalar_lea.vmem [#allocation3], %s312
        // Predicated region
        $region87: #{tpu_custom_call.1} parent=85 // pred_check
          %p314 = pneg %p44
        $region88: #{tpu_custom_call.1} parent=85 // pred_check_branch
          %316 = sbr.rel (%p314) target = $region90
        $region89: #{tpu_custom_call.1} parent=85 // pred_region
          _
        $region90: #{tpu_custom_call.1} parent=85 // pred_fallthru
          _
        %s317 = sand.u32 %s31, 1
        %s318 = sand.u32 %s31, 1
        %s319 = smul.addr %s318, 16
        %s320 = scalar_lea.vmem [#allocation3], %s319
        %p321 = pneg %p44
        %p322 = pneg %p41
        %p323 = pneg %p65
        %p324 = pneg %p62
        %p325 = pneg %p86
        %p326 = pneg %p83
        %p327 = pneg %p107
        %p328 = pneg %p104
        %p329 = pneg %p128
        %p330 = pneg %p125
        %p331 = pneg %p149
        %p332 = pneg %p146
        %p333 = pneg %p170
        %p334 = pneg %p167
        %p335 = pneg %p191
        %p336 = pneg %p188
        %p337 = pneg %p217
        %p338 = pneg %p214
        %s339 = sand.u32 %s204, 1
        %s340 = scalar_lea.sflag [#allocation5], %s339
        %s341 = sand.u32 %s204, 1
        %s342 = smul.addr %s341, 8
        %s343 = scalar_lea.vmem [#allocation4], %s342
        %v344 = vld [vmem:[%s1] sm:$0xff]
        %v345 = vld [vmem:[%s1 + $0x8] sm:$0xff]
        %v346 = vld [vmem:[%s1 + $0x10] sm:$0xff]
        %v347 = vld [vmem:[%s1 + $0x18] sm:$0xff]
        %v348 = vld [vmem:[%s313] sm:$0xff]
        %v349 = vld [vmem:[%s313 + $0x8] sm:$0xff]
        %v350 = vld [vmem:[%s2] sm:$0xff]
        %v351 = vld [vmem:[%s2 + $0x8] sm:$0xff]
        %v352 = vld [vmem:[%s2 + $0x10] sm:$0xff]
        %v353 = vld [vmem:[%s2 + $0x18] sm:$0xff]
        %355 = vset.pattern.permute.xlu0 0
        %356 = vperm.xlu0 %355, %v350
        %v357 = vpop.permute.xlu0 %356
        %360 = vset.pattern.permute.xlu0 0
        %361 = vperm.xlu0 %360, %v351
        %v362 = vpop.permute.xlu0 %361
        %365 = vset.pattern.permute.xlu0 0
        %366 = vperm.xlu0 %365, %v352
        %v367 = vpop.permute.xlu0 %366
        %370 = vset.pattern.permute.xlu0 0
        %371 = vperm.xlu0 %370, %v353
        %v372 = vpop.permute.xlu0 %371
        %vm374 = vcmask 130048
        %v376 = vsel %vm374, %v344, 0
        %v379 = vsel %vm374, %v345, 0
        %v382 = vsel %vm374, %v346, 0
        %v385 = vsel %vm374, %v347, 0
        %387 = vmatpush.msra.mxu0 0.0
        %388 = vmatpush.msra.mxu0 0.0
        %389 = vmatpush.msra.mxu0 0.0
        %390 = vmatpush.msra.mxu0 0.0
        %391 = vmatpush.msra.mxu0 0.0
        %392 = vmatpush.msra.mxu0 0.0
        %393 = vmatpush.msra.mxu0 0.0
        %394 = vmatpush.msra.mxu0 0.0
        %395 = vmatpush.msra.mxu0 0.0
        %396 = vmatpush.msra.mxu0 0.0
        %397 = vmatpush.msra.mxu0 0.0
        %398 = vmatpush.msra.mxu0 0.0
        %399 = vmatpush.msra.mxu0 0.0
        %400 = vmatpush.msra.mxu0 0.0
        %401 = vmatpush.msra.mxu0 %v349
        %402 = vmatpush.msra.mxu0 %v348
        %403 = vmatmul.f32.gmra.mxu0 %v376
        %v404 = vpop.f32.mrf.mxu0
        %v405 = vadd.f32 %v357, %v404
        %406 = vmatmul.f32.gmra.mxu0 %v379
        %v407 = vpop.f32.mrf.mxu0
        %v408 = vadd.f32 %v362, %v407
        %409 = vmatmul.f32.gmra.mxu0 %v382
        %v410 = vpop.f32.mrf.mxu0
        %v411 = vadd.f32 %v367, %v410
        %412 = vmatmul.f32.gmra.mxu0 %v385
        %v413 = vpop.f32.mrf.mxu0
        %v414 = vadd.f32 %v372, %v413
        %415 = vdwg.mxu0
        %v416 = vtanh.pop %v405
        %v417 = vtanh.pop %v408
        %v418 = vtanh.pop %v411
        %v419 = vtanh.pop %v414
        %v420 = vld [vmem:[%s3] sm:$0xff]
        %v421 = vld [vmem:[%s3 + $0x8] sm:$0xff]
        %v422 = vld [vmem:[%s3 + $0x10] sm:$0xff]
        %v423 = vld [vmem:[%s3 + $0x18] sm:$0xff]
        %v424 = vld [vmem:[%s4] sm:$0xff]
        %v425 = vld [vmem:[%s4 + $0x8] sm:$0xff]
        %v426 = vld [vmem:[%s4 + $0x10] sm:$0xff]
        %v427 = vld [vmem:[%s4 + $0x18] sm:$0xff]
        %429 = vset.pattern.permute.xlu0 0
        %430 = vperm.xlu0 %429, %v424
        %v431 = vpop.permute.xlu0 %430
        %434 = vset.pattern.permute.xlu0 0
        %435 = vperm.xlu0 %434, %v425
        %v436 = vpop.permute.xlu0 %435
        %439 = vset.pattern.permute.xlu0 0
        %440 = vperm.xlu0 %439, %v426
        %v441 = vpop.permute.xlu0 %440
        %444 = vset.pattern.permute.xlu0 0
        %445 = vperm.xlu0 %444, %v427
        %v446 = vpop.permute.xlu0 %445
        %vm448 = vcmask 261120
        %v450 = vsel %vm448, %v420, 0
        %v453 = vsel %vm448, %v421, 0
        %v456 = vsel %vm448, %v422, 0
        %v459 = vsel %vm448, %v423, 0
        %461 = vmatpush.msra.mxu0 0.0
        %462 = vmatpush.msra.mxu0 0.0
        %463 = vmatpush.msra.mxu0 0.0
        %464 = vmatpush.msra.mxu0 0.0
        %465 = vmatpush.msra.mxu0 0.0
        %466 = vmatpush.msra.mxu0 0.0
        %467 = vmatpush.msra.mxu0 0.0
        %468 = vmatpush.msra.mxu0 0.0
        %469 = vmatpush.msra.mxu0 0.0
        %470 = vmatpush.msra.mxu0 0.0
        %471 = vmatpush.msra.mxu0 0.0
        %472 = vmatpush.msra.mxu0 0.0
        %473 = vmatpush.msra.mxu0 %v419
        %474 = vmatpush.msra.mxu0 %v418
        %475 = vmatpush.msra.mxu0 %v417
        %476 = vmatpush.msra.mxu0 %v416
        %477 = vmatmul.f32.gmra.mxu0 %v450
        %v478 = vpop.f32.mrf.mxu0
        %v479 = vadd.f32 %v431, %v478
        %480 = vmatmul.f32.gmra.mxu0 %v453
        %v481 = vpop.f32.mrf.mxu0
        %v482 = vadd.f32 %v436, %v481
        %483 = vmatmul.f32.gmra.mxu0 %v456
        %v484 = vpop.f32.mrf.mxu0
        %v485 = vadd.f32 %v441, %v484
        %486 = vmatmul.f32.gmra.mxu0 %v459
        %v487 = vpop.f32.mrf.mxu0
        %v488 = vadd.f32 %v446, %v487
        %489 = vdwg.mxu0
        %v490 = vtanh.pop %v479
        %v491 = vtanh.pop %v482
        %v492 = vtanh.pop %v485
        %v493 = vtanh.pop %v488
        %v494 = vld [vmem:[%s5] sm:$0xff]
        %v495 = vld [vmem:[%s6] sm:$0xff]
        %497 = vset.pattern.permute.xlu0 0
        %498 = vperm.xlu0 %497, %v495
        %v499 = vpop.permute.xlu0 %498
        %v502 = vsel %vm448, %v494, 0
        %504 = vmatpush.msra.mxu0 0.0
        %505 = vmatpush.msra.mxu0 0.0
        %506 = vmatpush.msra.mxu0 0.0
        %507 = vmatpush.msra.mxu0 0.0
        %508 = vmatpush.msra.mxu0 0.0
        %509 = vmatpush.msra.mxu0 0.0
        %510 = vmatpush.msra.mxu0 0.0
        %511 = vmatpush.msra.mxu0 0.0
        %512 = vmatpush.msra.mxu0 0.0
        %513 = vmatpush.msra.mxu0 0.0
        %514 = vmatpush.msra.mxu0 0.0
        %515 = vmatpush.msra.mxu0 0.0
        %516 = vmatpush.msra.mxu0 %v493
        %517 = vmatpush.msra.mxu0 %v492
        %518 = vmatpush.msra.mxu0 %v491
        %519 = vmatpush.msra.mxu0 %v490
        %520 = vmatmul.f32.gmra.mxu0 %v502
        %v521 = vpop.f32.mrf.mxu0
        %v522 = vadd.f32 %v499, %v521
        %523 = vdwg.mxu0
        %v524 = vtanh.pop %v522
        %s525 = sld [smem:[#allocation2]]
        %v526 = vstv %s525
        %v527 = vmul.f32 %v524, %v526
        %528 = vst [vmem:[%s343] sm:$0xff] %v527
        %s529 = sand.u32 %s204, 1
        %s530 = scalar_lea.sflag [#allocation5], %s529
        %s531 = sand.u32 %s204, 1
        %s532 = smul.addr %s531, 8
        %s533 = scalar_lea.vmem [#allocation4], %s532
        // Predicated region
        $region91: #{tpu_custom_call.1} parent=85 // pred_check
          %p534 = pneg %p214
        $region92: #{tpu_custom_call.1} parent=85 // pred_check_branch
          %536 = sbr.rel (%p534) target = $region94
        $region93: #{tpu_custom_call.1} parent=85 // pred_region
          %538 = vsyncadd %s530, 0
          %s539 = smul.addr %s23, 8
          %s540 = scalar_lea.hbm %s8, %s539
          %s542 = sshll.u32 %s533, 4
          %s543 = int_to_ptr.vmem [resolvable:$true] %s542
          %s544 = sshll.u32 %s540, 4
          %s545 = int_to_ptr.hbm [resolvable:$true] %s544
          %547 = dma.vmem_to_hbm [thread:$0]  %s543, 128, %s545, %s530
        $region94: #{tpu_custom_call.1} parent=85 // pred_fallthru
          _
      $region86: #{tpu_custom_call.1} parent=5 // pred_fallthru
        _
      %p548 = scmp.le.s32.totalorder 2, %s18
      // Predicated region
      $region95: #{tpu_custom_call.1} parent=5 // pred_check
        %p549 = pneg %p548
      $region96: #{tpu_custom_call.1} parent=5 // pred_check_branch
        %551 = sbr.rel (%p549) target = $region98
      $region97: #{tpu_custom_call.1} parent=5 // pred_region
        %s552 = ssub.s32 %s18, 2
        // Predicated region
        $region99: #{tpu_custom_call.1} parent=97 // pred_check
          %p553 = pneg %p220
        $region100: #{tpu_custom_call.1} parent=97 // pred_check_branch
          %555 = sbr.rel (%p553) target = $region102
        $region101: #{tpu_custom_call.1} parent=97 // pred_region
          %s556 = sand.u32 %s205, 1
          %s557 = scalar_lea.sflag [#allocation5], %s556
          %s558 = sand.u32 %s205, 1
          %s559 = smul.addr %s558, 8
          %s560 = scalar_lea.vmem [#allocation4], %s559
          %562 = dma.done %s557, 128
        $region102: #{tpu_custom_call.1} parent=97 // pred_fallthru
          _
      $region98: #{tpu_custom_call.1} parent=5 // pred_fallthru
        _
    $region6: #{tpu_custom_call.1} parent=1 // loop_footer
      %s22 = sadd.s32 1, %s18
    $region7: #{tpu_custom_call.1} parent=1 // loop_footer_branch
      %17 = sbr.rel target = $region3
    $region8: #{tpu_custom_call.1} parent=1 // loop_exit
      _
    %563 = vsyncpa [#allocation5], 1
    %s564 = scalar_lea.sflag [#allocation5], 1
    %565 = vsyncpa %s564, 1

</llo_original>
